<compile_context>
chip_gen: v5e
topology: v5e:2x2
jax: 0.10.0
libtpu: 0.0.40
codegen_flags: <defaults>
</compile_context>

<pallas_src>
import functools

import jax
import jax.numpy as jnp
from jax.experimental import pallas as pl
from jax.experimental.pallas import tpu as pltpu


def cross_attn_kernel(q_ref, kv_ref, wq_ref, wkv_ref, wo_ref,
                      bq_ref, bkv_ref, bo_ref,
                      out_ref, attw_ref, ctx_ref,
                      *, num_heads, lq, lk):
    """One batch tile per grid step.  Rows of q_ref / kv_ref are (batch, token)
    flattened, so the projections see batch_tile * L sublane rows on the MXU."""
    D = wq_ref.shape[0]
    hd = D // num_heads
    bt = q_ref.shape[0] // lq
    inv_heads = 1.0 / num_heads

    # Batch-folded projections.  The 1/sqrt(hd) scale and the token-type
    # embeddings are already folded into wq/bq and the per-token K/V bias.
    q = jnp.dot(q_ref[...], wq_ref[...],
                preferred_element_type=jnp.float32) + bq_ref[...]        # (bt*lq, D)
    kvp = (jnp.dot(kv_ref[...], wkv_ref[...],
                   preferred_element_type=jnp.float32)
           + bkv_ref[...])                                               # (bt*lk, 2D) = [K | V]

    # Attention per (batch, head).  Both loops are tiny, static and unrolled.
    for b in range(bt):
        q0, q1 = b * lq, (b + 1) * lq
        r0, r1 = b * lk, (b + 1) * lk
        attw_b = jnp.zeros((lq, lk), jnp.float32)
        for h in range(num_heads):
            lo, hi = h * hd, (h + 1) * hd
            qh = q[q0:q1, lo:hi]                       # (lq, hd), pre-scaled
            kh = kvp[r0:r1, lo:hi]                     # (lk, hd)
            vh = kvp[r0:r1, D + lo:D + hi]             # (lk, hd)
            s = jnp.dot(qh, kh.T, preferred_element_type=jnp.float32)    # (lq, lk)
            s = s - jnp.max(s, axis=-1, keepdims=True)
            e = jnp.exp(s)
            p = e * pl.reciprocal(jnp.sum(e, axis=-1, keepdims=True), approx=True)
            attw_b = attw_b + p
            # Write the head's context straight into its lane slice of the
            # scratch accumulator (no concatenate / extra materialization).
            ctx_ref[q0:q1, lo:hi] = jnp.dot(p, vh,
                                            preferred_element_type=jnp.float32)
        attw_ref[q0:q1, :] = (attw_b * inv_heads).astype(attw_ref.dtype)

    # Output projection over the whole batch tile at once.
    out = jnp.dot(ctx_ref[...], wo_ref[...],
                  preferred_element_type=jnp.float32) + bo_ref[...]
    out_ref[...] = out.astype(out_ref.dtype)


def _pick_batch_tile(B, Lq, Lk):
    """Fold enough batch elements per grid step to fill ~128 MXU rows, but keep
    >= 2 grid steps (v7x has two TensorCores) when that does not shrink the
    projection row count below the target."""
    target_rows = 128
    bt = min(B, max(1, pl.cdiv(target_rows, Lq)))
    while B % bt:
        bt -= 1
    if B // bt < 2 and B % 2 == 0 and (B // 2) * Lq >= target_rows:
        bt = B // 2
    # Blocks that do not cover the whole array must keep sublane rows 8-aligned.
    if B // bt > 1 and ((bt * Lq) % 8 or (bt * Lk) % 8):
        bt = B
    return bt


def cross_attention_pallas(inputs, tok_emb, in_proj_w, in_proj_b,
                           out_proj_w, out_proj_b, num_heads, modalities=None):
    """Pallas forward of CrossAttention (inference, attention_masks=None).

    inputs      : sequence of (B, L_i, D) arrays; inputs[-1] is the query stream.
    tok_emb     : (num_modalities, D) token-type embedding table.
    in_proj_w   : (3D, D) torch MultiheadAttention in_proj_weight.
    in_proj_b   : (3D,)   in_proj_bias.
    out_proj_w  : (D, D)  out_proj.weight;  out_proj_b: (D,).
    """
    if modalities is None:
        modalities = tuple(range(len(inputs)))
    assert len(inputs) == len(modalities)

    x_q = inputs[-1]
    conds = list(inputs[:-1])
    B, Lq, D = x_q.shape
    kv = conds[0] if len(conds) == 1 else jnp.concatenate(conds, axis=1)
    Lk = kv.shape[1]
    hd = D // num_heads
    scale = 1.0 / float(hd) ** 0.5

    # Split packed in_proj into (in_features, out_features) layout.
    wq_t = in_proj_w[:D].T
    wk_t = in_proj_w[D:2 * D].T
    wv_t = in_proj_w[2 * D:].T
    bq = in_proj_b[:D]
    bk = in_proj_b[D:2 * D]
    bv = in_proj_b[2 * D:]

    # (x + e) @ W + b == x @ W + (e @ W + b): fold the token-type-embedding
    # adds into the projection biases (tiny constant prep — avoids an extra
    # HBM read+write of the full (B, L, D) tensors).
    e_q = tok_emb[modalities[-1]]                                        # (D,)
    e_kv = jnp.concatenate(
        [jnp.broadcast_to(tok_emb[m], (inp.shape[1], D))
         for m, inp in zip(modalities[:-1], conds)], axis=0)             # (Lk, D)

    # Fold the 1/sqrt(head_dim) query scaling into wq/bq (constant folding).
    wq_s = wq_t * scale
    bq_s = ((bq + e_q @ wq_t) * scale).reshape(1, D)

    # Fuse K and V projections into one (D, 2D) matmul.
    wkv = jnp.concatenate([wk_t, wv_t], axis=1)                          # (D, 2D)
    bkv = jnp.concatenate([bk, bv])                                      # (2D,)
    bkv_tok = e_kv @ wkv + bkv[None, :]                                  # (Lk, 2D)

    wo_t = out_proj_w.T
    bo = out_proj_b.reshape(1, D)

    bt = _pick_batch_tile(B, Lq, Lk)
    nsteps = B // bt
    bkv_tile = jnp.tile(bkv_tok, (bt, 1))                                # (bt*Lk, 2D)

    # Flatten (batch, token) into the sublane dim; contiguous reshape = free.
    q_flat = x_q.reshape(B * Lq, D)
    kv_flat = kv.reshape(B * Lk, D)

    kernel = functools.partial(cross_attn_kernel,
                               num_heads=num_heads, lq=Lq, lk=Lk)

    def full(shape):
        return pl.BlockSpec(shape, lambda b: (0, 0))

    out_flat, attw_flat = pl.pallas_call(
        kernel,
        grid=(nsteps,),
        in_specs=[
            pl.BlockSpec((bt * Lq, D), lambda b: (b, 0)),
            pl.BlockSpec((bt * Lk, D), lambda b: (b, 0)),
            full((D, D)), full((D, 2 * D)), full((D, D)),
            full((1, D)), full((bt * Lk, 2 * D)), full((1, D)),
        ],
        out_specs=[
            pl.BlockSpec((bt * Lq, D), lambda b: (b, 0)),
            pl.BlockSpec((bt * Lq, Lk), lambda b: (b, 0)),
        ],
        out_shape=[
            jax.ShapeDtypeStruct((B * Lq, D), x_q.dtype),
            jax.ShapeDtypeStruct((B * Lq, Lk), jnp.float32),
        ],
        scratch_shapes=[pltpu.VMEM((bt * Lq, D), jnp.float32)],
        compiler_params=pltpu.CompilerParams(dimension_semantics=("parallel",)),
    )(q_flat, kv_flat, wq_s, wkv, wo_t, bq_s, bkv_tile, bo)

    return out_flat.reshape(B, Lq, D), attw_flat.reshape(B, Lq, Lk)


def reference_mha(query_tokens, cond_tokens, wq_t, wk_t, wv_t, wo_t,
                  bq, bk, bv, bo, num_heads):
    """Pure-JAX reference matching torch.nn.MultiheadAttention (eval)."""
    B, Lq, D = query_tokens.shape
    Lk = cond_tokens.shape[1]
    hd = D // num_heads
    q = query_tokens @ wq_t + bq
    k = cond_tokens @ wk_t + bk
    v = cond_tokens @ wv_t + bv
    q = q.reshape(B, Lq, num_heads, hd).transpose(0, 2, 1, 3) / (hd ** 0.5)
    k = k.reshape(B, Lk, num_heads, hd).transpose(0, 2, 1, 3)
    v = v.reshape(B, Lk, num_heads, hd).transpose(0, 2, 1, 3)
    s = jnp.einsum("bhqd,bhkd->bhqk", q, k)
    p = jax.nn.softmax(s, axis=-1)
    ctx = jnp.einsum("bhqk,bhkd->bhqd", p, v)
    ctx = ctx.transpose(0, 2, 1, 3).reshape(B, Lq, D)
    out = ctx @ wo_t + bo
    return out, p.mean(axis=1)


if __name__ == "__main__":
    # Module hyper-params (small, consistent with CrossAttention.__init__).
    dim, heads, num_modalities = 32, 4, 2
    B, L_cond, L_query = 2, 12, 8

    key = jax.random.PRNGKey(0)
    k_x0, k_x1, k_emb, k_win, k_bin, k_wout, k_bout = jax.random.split(key, 7)

    # Forward inputs: two modalities.  inputs[-1] is the query stream.
    x_cond = jax.random.normal(k_x0, (B, L_cond, dim), jnp.float32)    # modality 0
    x_query = jax.random.normal(k_x1, (B, L_query, dim), jnp.float32)  # modality 1

    # Deterministic synthetic parameters (no checkpoint).
    tok_emb = 0.02 * jax.random.normal(k_emb, (num_modalities, dim), jnp.float32)
    in_proj_w = 0.1 * jax.random.normal(k_win, (3 * dim, dim), jnp.float32)
    in_proj_b = 0.1 * jax.random.normal(k_bin, (3 * dim,), jnp.float32)
    out_proj_w = 0.1 * jax.random.normal(k_wout, (dim, dim), jnp.float32)
    out_proj_b = 0.1 * jax.random.normal(k_bout, (dim,), jnp.float32)

    fused, attw = cross_attention_pallas(
        (x_cond, x_query), tok_emb, in_proj_w, in_proj_b,
        out_proj_w, out_proj_b, heads, modalities=(0, 1))
    jax.block_until_ready((fused, attw))

    # Pure-JAX reference of the module semantics (explicit embedding adds).
    cond_tokens = x_cond + tok_emb[0][None, None, :]
    query_tokens = x_query + tok_emb[1][None, None, :]
    wq_t = in_proj_w[:dim].T
    wk_t = in_proj_w[dim:2 * dim].T
    wv_t = in_proj_w[2 * dim:].T
    bq = in_proj_b[:dim].reshape(1, dim)
    bk = in_proj_b[dim:2 * dim].reshape(1, dim)
    bv = in_proj_b[2 * dim:].reshape(1, dim)
    ref_out, ref_w = reference_mha(query_tokens, cond_tokens,
                                   wq_t, wk_t, wv_t, out_proj_w.T,
                                   bq, bk, bv, out_proj_b.reshape(1, dim), heads)

    assert fused.shape == (B, L_query, dim)
    assert attw.shape == (B, L_query, L_cond)
    # Tolerances account for the EUP approximate-reciprocal softmax normalization.
    assert jnp.allclose(fused, ref_out, atol=2e-2, rtol=2e-2), \
        float(jnp.max(jnp.abs(fused - ref_out)))
    assert jnp.allclose(attw, ref_w, atol=3e-3, rtol=1e-2), \
        float(jnp.max(jnp.abs(attw - ref_w)))

    print("KERNEL_OK")
</pallas_src>

<mosaic_0001>
module attributes {stable_mosaic.version = 11 : i64} {
  func.func @cross_attn_kernel(%arg0: i32, %arg1: memref<16x32xf32, #tpu.memory_space<vmem>>, %arg2: memref<24x32xf32, #tpu.memory_space<vmem>>, %arg3: memref<32x32xf32, #tpu.memory_space<vmem>>, %arg4: memref<32x64xf32, #tpu.memory_space<vmem>>, %arg5: memref<32x32xf32, #tpu.memory_space<vmem>>, %arg6: memref<1x32xf32, #tpu.memory_space<vmem>>, %arg7: memref<24x64xf32, #tpu.memory_space<vmem>>, %arg8: memref<1x32xf32, #tpu.memory_space<vmem>>, %arg9: memref<16x32xf32, #tpu.memory_space<vmem>>, %arg10: memref<16x12xf32, #tpu.memory_space<vmem>>, %arg11: memref<16x32xf32, #tpu.memory_space<vmem>>) attributes {dimension_semantics = [#tpu.dimension_semantics<parallel>], iteration_bounds = array<i64: 1>, scalar_prefetch = 0 : i64, scratch_operands = 1 : i64, tpu.core_type = #tpu.core_type<tc>, window_params = [{transform_indices = @transform_0, window_bounds = array<i64: 16, 32>}, {transform_indices = @transform_1, window_bounds = array<i64: 24, 32>}, {pipeline_mode = #tpu.pipeline_mode<synchronous>, transform_indices = @transform_2, window_bounds = array<i64: 32, 32>}, {pipeline_mode = #tpu.pipeline_mode<synchronous>, transform_indices = @transform_3, window_bounds = array<i64: 32, 64>}, {pipeline_mode = #tpu.pipeline_mode<synchronous>, transform_indices = @transform_4, window_bounds = array<i64: 32, 32>}, {pipeline_mode = #tpu.pipeline_mode<synchronous>, transform_indices = @transform_5, window_bounds = array<i64: 1, 32>}, {pipeline_mode = #tpu.pipeline_mode<synchronous>, transform_indices = @transform_6, window_bounds = array<i64: 24, 64>}, {pipeline_mode = #tpu.pipeline_mode<synchronous>, transform_indices = @transform_7, window_bounds = array<i64: 1, 32>}, {transform_indices = @transform_8, window_bounds = array<i64: 16, 32>}, {transform_indices = @transform_9, window_bounds = array<i64: 16, 12>}]} {
    %c0 = arith.constant 0 : index
    %c0_0 = arith.constant 0 : index
    %0 = vector.load %arg1[%c0, %c0_0] : memref<16x32xf32, #tpu.memory_space<vmem>>, vector<16x32xf32>
    %c0_1 = arith.constant 0 : index
    %c0_2 = arith.constant 0 : index
    %1 = vector.load %arg3[%c0_1, %c0_2] : memref<32x32xf32, #tpu.memory_space<vmem>>, vector<32x32xf32>
    %cst = arith.constant dense<0.000000e+00> : vector<16x32xf32>
    %2 = tpu.matmul %0, %1, %cst {dimension_numbers = #tpu.dot_dimension_numbers<[1], [0], [0], [1], [0, 0, 1, 1], [], []>} : vector<16x32xf32>, vector<32x32xf32>, vector<16x32xf32> -> vector<16x32xf32>
    %c0_3 = arith.constant 0 : index
    %c0_4 = arith.constant 0 : index
    %3 = vector.load %arg6[%c0_3, %c0_4] : memref<1x32xf32, #tpu.memory_space<vmem>>, vector<1x32xf32>
    %4 = vector.broadcast %3 : vector<1x32xf32> to vector<16x32xf32>
    %5 = arith.addf %2, %4 : vector<16x32xf32>
    %c0_5 = arith.constant 0 : index
    %c0_6 = arith.constant 0 : index
    %6 = vector.load %arg2[%c0_5, %c0_6] : memref<24x32xf32, #tpu.memory_space<vmem>>, vector<24x32xf32>
    %c0_7 = arith.constant 0 : index
    %c0_8 = arith.constant 0 : index
    %7 = vector.load %arg4[%c0_7, %c0_8] : memref<32x64xf32, #tpu.memory_space<vmem>>, vector<32x64xf32>
    %cst_9 = arith.constant dense<0.000000e+00> : vector<24x64xf32>
    %8 = tpu.matmul %6, %7, %cst_9 {dimension_numbers = #tpu.dot_dimension_numbers<[1], [0], [0], [1], [0, 0, 1, 1], [], []>} : vector<24x32xf32>, vector<32x64xf32>, vector<24x64xf32> -> vector<24x64xf32>
    %c0_10 = arith.constant 0 : index
    %c0_11 = arith.constant 0 : index
    %9 = vector.load %arg7[%c0_10, %c0_11] : memref<24x64xf32, #tpu.memory_space<vmem>>, vector<24x64xf32>
    %10 = arith.addf %8, %9 : vector<24x64xf32>
    %cst_12 = arith.constant 0.000000e+00 : f32
    %11 = vector.broadcast %cst_12 : f32 to vector<8x12xf32>
    %12 = vector.extract_strided_slice %5 {offsets = [0, 0], sizes = [8, 8], strides = [1, 1]} : vector<16x32xf32> to vector<8x8xf32>
    %13 = vector.extract_strided_slice %10 {offsets = [0, 0], sizes = [12, 8], strides = [1, 1]} : vector<24x64xf32> to vector<12x8xf32>
    %14 = vector.extract_strided_slice %10 {offsets = [0, 32], sizes = [12, 8], strides = [1, 1]} : vector<24x64xf32> to vector<12x8xf32>
    %15 = tpu.transpose %13, [1, 0] : vector<12x8xf32> -> vector<8x12xf32>
    %cst_13 = arith.constant dense<0.000000e+00> : vector<8x12xf32>
    %16 = tpu.matmul %12, %15, %cst_13 {dimension_numbers = #tpu.dot_dimension_numbers<[1], [0], [0], [1], [0, 0, 1, 1], [], []>} : vector<8x8xf32>, vector<8x12xf32>, vector<8x12xf32> -> vector<8x12xf32>
    %cst_14 = arith.constant dense<0xFF800000> : vector<8xf32>
    %17 = vector.multi_reduction <maximumf>, %16, %cst_14 [1] : vector<8x12xf32> to vector<8xf32>
    %18 = vector.shape_cast %17 : vector<8xf32> to vector<8x1xf32>
    %19 = vector.broadcast %18 : vector<8x1xf32> to vector<8x12xf32>
    %20 = arith.subf %16, %19 : vector<8x12xf32>
    %21 = math.exp %20 : vector<8x12xf32>
    %cst_15 = arith.constant dense<0.000000e+00> : vector<8xf32>
    %22 = vector.multi_reduction <add>, %21, %cst_15 [1] : vector<8x12xf32> to vector<8xf32>
    %23 = vector.shape_cast %22 : vector<8xf32> to vector<8x1xf32>
    %24 = tpu.reciprocal %23 {approx = true} : vector<8x1xf32> -> vector<8x1xf32>
    %25 = vector.broadcast %24 : vector<8x1xf32> to vector<8x12xf32>
    %26 = arith.mulf %21, %25 : vector<8x12xf32>
    %27 = arith.addf %11, %26 : vector<8x12xf32>
    %cst_16 = arith.constant dense<0.000000e+00> : vector<8x8xf32>
    %28 = tpu.matmul %26, %14, %cst_16 {dimension_numbers = #tpu.dot_dimension_numbers<[1], [0], [0], [1], [0, 0, 1, 1], [], []>} : vector<8x12xf32>, vector<12x8xf32>, vector<8x8xf32> -> vector<8x8xf32>
    %c0_17 = arith.constant 0 : index
    %c0_18 = arith.constant 0 : index
    %29 = vector.load %arg11[%c0_17, %c0_18] : memref<16x32xf32, #tpu.memory_space<vmem>>, vector<8x8xf32>
    tpu.vector_store %arg11[%c0_17, %c0_18], %28 {strides = array<i32>} : memref<16x32xf32, #tpu.memory_space<vmem>>, vector<8x8xf32>,
    %30 = vector.extract_strided_slice %5 {offsets = [0, 8], sizes = [8, 8], strides = [1, 1]} : vector<16x32xf32> to vector<8x8xf32>
    %31 = vector.extract_strided_slice %10 {offsets = [0, 8], sizes = [12, 8], strides = [1, 1]} : vector<24x64xf32> to vector<12x8xf32>
    %32 = vector.extract_strided_slice %10 {offsets = [0, 40], sizes = [12, 8], strides = [1, 1]} : vector<24x64xf32> to vector<12x8xf32>
    %33 = tpu.transpose %31, [1, 0] : vector<12x8xf32> -> vector<8x12xf32>
    %cst_19 = arith.constant dense<0.000000e+00> : vector<8x12xf32>
    %34 = tpu.matmul %30, %33, %cst_19 {dimension_numbers = #tpu.dot_dimension_numbers<[1], [0], [0], [1], [0, 0, 1, 1], [], []>} : vector<8x8xf32>, vector<8x12xf32>, vector<8x12xf32> -> vector<8x12xf32>
    %cst_20 = arith.constant dense<0xFF800000> : vector<8xf32>
    %35 = vector.multi_reduction <maximumf>, %34, %cst_20 [1] : vector<8x12xf32> to vector<8xf32>
    %36 = vector.shape_cast %35 : vector<8xf32> to vector<8x1xf32>
    %37 = vector.broadcast %36 : vector<8x1xf32> to vector<8x12xf32>
    %38 = arith.subf %34, %37 : vector<8x12xf32>
    %39 = math.exp %38 : vector<8x12xf32>
    %cst_21 = arith.constant dense<0.000000e+00> : vector<8xf32>
    %40 = vector.multi_reduction <add>, %39, %cst_21 [1] : vector<8x12xf32> to vector<8xf32>
    %41 = vector.shape_cast %40 : vector<8xf32> to vector<8x1xf32>
    %42 = tpu.reciprocal %41 {approx = true} : vector<8x1xf32> -> vector<8x1xf32>
    %43 = vector.broadcast %42 : vector<8x1xf32> to vector<8x12xf32>
    %44 = arith.mulf %39, %43 : vector<8x12xf32>
    %45 = arith.addf %27, %44 : vector<8x12xf32>
    %cst_22 = arith.constant dense<0.000000e+00> : vector<8x8xf32>
    %46 = tpu.matmul %44, %32, %cst_22 {dimension_numbers = #tpu.dot_dimension_numbers<[1], [0], [0], [1], [0, 0, 1, 1], [], []>} : vector<8x12xf32>, vector<12x8xf32>, vector<8x8xf32> -> vector<8x8xf32>
    %c0_23 = arith.constant 0 : index
    %c8 = arith.constant 8 : index
    %47 = vector.load %arg11[%c0_23, %c8] : memref<16x32xf32, #tpu.memory_space<vmem>>, vector<8x8xf32>
    tpu.vector_store %arg11[%c0_23, %c8], %46 {strides = array<i32>} : memref<16x32xf32, #tpu.memory_space<vmem>>, vector<8x8xf32>,
    %48 = vector.extract_strided_slice %5 {offsets = [0, 16], sizes = [8, 8], strides = [1, 1]} : vector<16x32xf32> to vector<8x8xf32>
    %49 = vector.extract_strided_slice %10 {offsets = [0, 16], sizes = [12, 8], strides = [1, 1]} : vector<24x64xf32> to vector<12x8xf32>
    %50 = vector.extract_strided_slice %10 {offsets = [0, 48], sizes = [12, 8], strides = [1, 1]} : vector<24x64xf32> to vector<12x8xf32>
    %51 = tpu.transpose %49, [1, 0] : vector<12x8xf32> -> vector<8x12xf32>
    %cst_24 = arith.constant dense<0.000000e+00> : vector<8x12xf32>
    %52 = tpu.matmul %48, %51, %cst_24 {dimension_numbers = #tpu.dot_dimension_numbers<[1], [0], [0], [1], [0, 0, 1, 1], [], []>} : vector<8x8xf32>, vector<8x12xf32>, vector<8x12xf32> -> vector<8x12xf32>
    %cst_25 = arith.constant dense<0xFF800000> : vector<8xf32>
    %53 = vector.multi_reduction <maximumf>, %52, %cst_25 [1] : vector<8x12xf32> to vector<8xf32>
    %54 = vector.shape_cast %53 : vector<8xf32> to vector<8x1xf32>
    %55 = vector.broadcast %54 : vector<8x1xf32> to vector<8x12xf32>
    %56 = arith.subf %52, %55 : vector<8x12xf32>
    %57 = math.exp %56 : vector<8x12xf32>
    %cst_26 = arith.constant dense<0.000000e+00> : vector<8xf32>
    %58 = vector.multi_reduction <add>, %57, %cst_26 [1] : vector<8x12xf32> to vector<8xf32>
    %59 = vector.shape_cast %58 : vector<8xf32> to vector<8x1xf32>
    %60 = tpu.reciprocal %59 {approx = true} : vector<8x1xf32> -> vector<8x1xf32>
    %61 = vector.broadcast %60 : vector<8x1xf32> to vector<8x12xf32>
    %62 = arith.mulf %57, %61 : vector<8x12xf32>
    %63 = arith.addf %45, %62 : vector<8x12xf32>
    %cst_27 = arith.constant dense<0.000000e+00> : vector<8x8xf32>
    %64 = tpu.matmul %62, %50, %cst_27 {dimension_numbers = #tpu.dot_dimension_numbers<[1], [0], [0], [1], [0, 0, 1, 1], [], []>} : vector<8x12xf32>, vector<12x8xf32>, vector<8x8xf32> -> vector<8x8xf32>
    %c0_28 = arith.constant 0 : index
    %c16 = arith.constant 16 : index
    %65 = vector.load %arg11[%c0_28, %c16] : memref<16x32xf32, #tpu.memory_space<vmem>>, vector<8x8xf32>
    tpu.vector_store %arg11[%c0_28, %c16], %64 {strides = array<i32>} : memref<16x32xf32, #tpu.memory_space<vmem>>, vector<8x8xf32>,
    %66 = vector.extract_strided_slice %5 {offsets = [0, 24], sizes = [8, 8], strides = [1, 1]} : vector<16x32xf32> to vector<8x8xf32>
    %67 = vector.extract_strided_slice %10 {offsets = [0, 24], sizes = [12, 8], strides = [1, 1]} : vector<24x64xf32> to vector<12x8xf32>
    %68 = vector.extract_strided_slice %10 {offsets = [0, 56], sizes = [12, 8], strides = [1, 1]} : vector<24x64xf32> to vector<12x8xf32>
    %69 = tpu.transpose %67, [1, 0] : vector<12x8xf32> -> vector<8x12xf32>
    %cst_29 = arith.constant dense<0.000000e+00> : vector<8x12xf32>
    %70 = tpu.matmul %66, %69, %cst_29 {dimension_numbers = #tpu.dot_dimension_numbers<[1], [0], [0], [1], [0, 0, 1, 1], [], []>} : vector<8x8xf32>, vector<8x12xf32>, vector<8x12xf32> -> vector<8x12xf32>
    %cst_30 = arith.constant dense<0xFF800000> : vector<8xf32>
    %71 = vector.multi_reduction <maximumf>, %70, %cst_30 [1] : vector<8x12xf32> to vector<8xf32>
    %72 = vector.shape_cast %71 : vector<8xf32> to vector<8x1xf32>
    %73 = vector.broadcast %72 : vector<8x1xf32> to vector<8x12xf32>
    %74 = arith.subf %70, %73 : vector<8x12xf32>
    %75 = math.exp %74 : vector<8x12xf32>
    %cst_31 = arith.constant dense<0.000000e+00> : vector<8xf32>
    %76 = vector.multi_reduction <add>, %75, %cst_31 [1] : vector<8x12xf32> to vector<8xf32>
    %77 = vector.shape_cast %76 : vector<8xf32> to vector<8x1xf32>
    %78 = tpu.reciprocal %77 {approx = true} : vector<8x1xf32> -> vector<8x1xf32>
    %79 = vector.broadcast %78 : vector<8x1xf32> to vector<8x12xf32>
    %80 = arith.mulf %75, %79 : vector<8x12xf32>
    %81 = arith.addf %63, %80 : vector<8x12xf32>
    %cst_32 = arith.constant dense<0.000000e+00> : vector<8x8xf32>
    %82 = tpu.matmul %80, %68, %cst_32 {dimension_numbers = #tpu.dot_dimension_numbers<[1], [0], [0], [1], [0, 0, 1, 1], [], []>} : vector<8x12xf32>, vector<12x8xf32>, vector<8x8xf32> -> vector<8x8xf32>
    %c0_33 = arith.constant 0 : index
    %c24 = arith.constant 24 : index
    %83 = vector.load %arg11[%c0_33, %c24] : memref<16x32xf32, #tpu.memory_space<vmem>>, vector<8x8xf32>
    tpu.vector_store %arg11[%c0_33, %c24], %82 {strides = array<i32>} : memref<16x32xf32, #tpu.memory_space<vmem>>, vector<8x8xf32>,
    %cst_34 = arith.constant 2.500000e-01 : f32
    %84 = vector.broadcast %cst_34 : f32 to vector<8x12xf32>
    %85 = arith.mulf %81, %84 : vector<8x12xf32>
    %c0_35 = arith.constant 0 : index
    %c0_36 = arith.constant 0 : index
    %86 = vector.load %arg10[%c0_35, %c0_36] : memref<16x12xf32, #tpu.memory_space<vmem>>, vector<8x12xf32>
    tpu.vector_store %arg10[%c0_35, %c0_36], %85 {strides = array<i32>} : memref<16x12xf32, #tpu.memory_space<vmem>>, vector<8x12xf32>,
    %cst_37 = arith.constant 0.000000e+00 : f32
    %87 = vector.broadcast %cst_37 : f32 to vector<8x12xf32>
    %88 = vector.extract_strided_slice %5 {offsets = [8, 0], sizes = [8, 8], strides = [1, 1]} : vector<16x32xf32> to vector<8x8xf32>
    %89 = vector.extract_strided_slice %10 {offsets = [12, 0], sizes = [12, 8], strides = [1, 1]} : vector<24x64xf32> to vector<12x8xf32>
    %90 = vector.extract_strided_slice %10 {offsets = [12, 32], sizes = [12, 8], strides = [1, 1]} : vector<24x64xf32> to vector<12x8xf32>
    %91 = tpu.transpose %89, [1, 0] : vector<12x8xf32> -> vector<8x12xf32>
    %cst_38 = arith.constant dense<0.000000e+00> : vector<8x12xf32>
    %92 = tpu.matmul %88, %91, %cst_38 {dimension_numbers = #tpu.dot_dimension_numbers<[1], [0], [0], [1], [0, 0, 1, 1], [], []>} : vector<8x8xf32>, vector<8x12xf32>, vector<8x12xf32> -> vector<8x12xf32>
    %cst_39 = arith.constant dense<0xFF800000> : vector<8xf32>
    %93 = vector.multi_reduction <maximumf>, %92, %cst_39 [1] : vector<8x12xf32> to vector<8xf32>
    %94 = vector.shape_cast %93 : vector<8xf32> to vector<8x1xf32>
    %95 = vector.broadcast %94 : vector<8x1xf32> to vector<8x12xf32>
    %96 = arith.subf %92, %95 : vector<8x12xf32>
    %97 = math.exp %96 : vector<8x12xf32>
    %cst_40 = arith.constant dense<0.000000e+00> : vector<8xf32>
    %98 = vector.multi_reduction <add>, %97, %cst_40 [1] : vector<8x12xf32> to vector<8xf32>
    %99 = vector.shape_cast %98 : vector<8xf32> to vector<8x1xf32>
    %100 = tpu.reciprocal %99 {approx = true} : vector<8x1xf32> -> vector<8x1xf32>
    %101 = vector.broadcast %100 : vector<8x1xf32> to vector<8x12xf32>
    %102 = arith.mulf %97, %101 : vector<8x12xf32>
    %103 = arith.addf %87, %102 : vector<8x12xf32>
    %cst_41 = arith.constant dense<0.000000e+00> : vector<8x8xf32>
    %104 = tpu.matmul %102, %90, %cst_41 {dimension_numbers = #tpu.dot_dimension_numbers<[1], [0], [0], [1], [0, 0, 1, 1], [], []>} : vector<8x12xf32>, vector<12x8xf32>, vector<8x8xf32> -> vector<8x8xf32>
    %c8_42 = arith.constant 8 : index
    %c0_43 = arith.constant 0 : index
    %105 = vector.load %arg11[%c8_42, %c0_43] : memref<16x32xf32, #tpu.memory_space<vmem>>, vector<8x8xf32>
    tpu.vector_store %arg11[%c8_42, %c0_43], %104 {strides = array<i32>} : memref<16x32xf32, #tpu.memory_space<vmem>>, vector<8x8xf32>,
    %106 = vector.extract_strided_slice %5 {offsets = [8, 8], sizes = [8, 8], strides = [1, 1]} : vector<16x32xf32> to vector<8x8xf32>
    %107 = vector.extract_strided_slice %10 {offsets = [12, 8], sizes = [12, 8], strides = [1, 1]} : vector<24x64xf32> to vector<12x8xf32>
    %108 = vector.extract_strided_slice %10 {offsets = [12, 40], sizes = [12, 8], strides = [1, 1]} : vector<24x64xf32> to vector<12x8xf32>
    %109 = tpu.transpose %107, [1, 0] : vector<12x8xf32> -> vector<8x12xf32>
    %cst_44 = arith.constant dense<0.000000e+00> : vector<8x12xf32>
    %110 = tpu.matmul %106, %109, %cst_44 {dimension_numbers = #tpu.dot_dimension_numbers<[1], [0], [0], [1], [0, 0, 1, 1], [], []>} : vector<8x8xf32>, vector<8x12xf32>, vector<8x12xf32> -> vector<8x12xf32>
    %cst_45 = arith.constant dense<0xFF800000> : vector<8xf32>
    %111 = vector.multi_reduction <maximumf>, %110, %cst_45 [1] : vector<8x12xf32> to vector<8xf32>
    %112 = vector.shape_cast %111 : vector<8xf32> to vector<8x1xf32>
    %113 = vector.broadcast %112 : vector<8x1xf32> to vector<8x12xf32>
    %114 = arith.subf %110, %113 : vector<8x12xf32>
    %115 = math.exp %114 : vector<8x12xf32>
    %cst_46 = arith.constant dense<0.000000e+00> : vector<8xf32>
    %116 = vector.multi_reduction <add>, %115, %cst_46 [1] : vector<8x12xf32> to vector<8xf32>
    %117 = vector.shape_cast %116 : vector<8xf32> to vector<8x1xf32>
    %118 = tpu.reciprocal %117 {approx = true} : vector<8x1xf32> -> vector<8x1xf32>
    %119 = vector.broadcast %118 : vector<8x1xf32> to vector<8x12xf32>
    %120 = arith.mulf %115, %119 : vector<8x12xf32>
    %121 = arith.addf %103, %120 : vector<8x12xf32>
    %cst_47 = arith.constant dense<0.000000e+00> : vector<8x8xf32>
    %122 = tpu.matmul %120, %108, %cst_47 {dimension_numbers = #tpu.dot_dimension_numbers<[1], [0], [0], [1], [0, 0, 1, 1], [], []>} : vector<8x12xf32>, vector<12x8xf32>, vector<8x8xf32> -> vector<8x8xf32>
    %c8_48 = arith.constant 8 : index
    %c8_49 = arith.constant 8 : index
    %123 = vector.load %arg11[%c8_48, %c8_49] : memref<16x32xf32, #tpu.memory_space<vmem>>, vector<8x8xf32>
    tpu.vector_store %arg11[%c8_48, %c8_49], %122 {strides = array<i32>} : memref<16x32xf32, #tpu.memory_space<vmem>>, vector<8x8xf32>,
    %124 = vector.extract_strided_slice %5 {offsets = [8, 16], sizes = [8, 8], strides = [1, 1]} : vector<16x32xf32> to vector<8x8xf32>
    %125 = vector.extract_strided_slice %10 {offsets = [12, 16], sizes = [12, 8], strides = [1, 1]} : vector<24x64xf32> to vector<12x8xf32>
    %126 = vector.extract_strided_slice %10 {offsets = [12, 48], sizes = [12, 8], strides = [1, 1]} : vector<24x64xf32> to vector<12x8xf32>
    %127 = tpu.transpose %125, [1, 0] : vector<12x8xf32> -> vector<8x12xf32>
    %cst_50 = arith.constant dense<0.000000e+00> : vector<8x12xf32>
    %128 = tpu.matmul %124, %127, %cst_50 {dimension_numbers = #tpu.dot_dimension_numbers<[1], [0], [0], [1], [0, 0, 1, 1], [], []>} : vector<8x8xf32>, vector<8x12xf32>, vector<8x12xf32> -> vector<8x12xf32>
    %cst_51 = arith.constant dense<0xFF800000> : vector<8xf32>
    %129 = vector.multi_reduction <maximumf>, %128, %cst_51 [1] : vector<8x12xf32> to vector<8xf32>
    %130 = vector.shape_cast %129 : vector<8xf32> to vector<8x1xf32>
    %131 = vector.broadcast %130 : vector<8x1xf32> to vector<8x12xf32>
    %132 = arith.subf %128, %131 : vector<8x12xf32>
    %133 = math.exp %132 : vector<8x12xf32>
    %cst_52 = arith.constant dense<0.000000e+00> : vector<8xf32>
    %134 = vector.multi_reduction <add>, %133, %cst_52 [1] : vector<8x12xf32> to vector<8xf32>
    %135 = vector.shape_cast %134 : vector<8xf32> to vector<8x1xf32>
    %136 = tpu.reciprocal %135 {approx = true} : vector<8x1xf32> -> vector<8x1xf32>
    %137 = vector.broadcast %136 : vector<8x1xf32> to vector<8x12xf32>
    %138 = arith.mulf %133, %137 : vector<8x12xf32>
    %139 = arith.addf %121, %138 : vector<8x12xf32>
    %cst_53 = arith.constant dense<0.000000e+00> : vector<8x8xf32>
    %140 = tpu.matmul %138, %126, %cst_53 {dimension_numbers = #tpu.dot_dimension_numbers<[1], [0], [0], [1], [0, 0, 1, 1], [], []>} : vector<8x12xf32>, vector<12x8xf32>, vector<8x8xf32> -> vector<8x8xf32>
    %c8_54 = arith.constant 8 : index
    %c16_55 = arith.constant 16 : index
    %141 = vector.load %arg11[%c8_54, %c16_55] : memref<16x32xf32, #tpu.memory_space<vmem>>, vector<8x8xf32>
    tpu.vector_store %arg11[%c8_54, %c16_55], %140 {strides = array<i32>} : memref<16x32xf32, #tpu.memory_space<vmem>>, vector<8x8xf32>,
    %142 = vector.extract_strided_slice %5 {offsets = [8, 24], sizes = [8, 8], strides = [1, 1]} : vector<16x32xf32> to vector<8x8xf32>
    %143 = vector.extract_strided_slice %10 {offsets = [12, 24], sizes = [12, 8], strides = [1, 1]} : vector<24x64xf32> to vector<12x8xf32>
    %144 = vector.extract_strided_slice %10 {offsets = [12, 56], sizes = [12, 8], strides = [1, 1]} : vector<24x64xf32> to vector<12x8xf32>
    %145 = tpu.transpose %143, [1, 0] : vector<12x8xf32> -> vector<8x12xf32>
    %cst_56 = arith.constant dense<0.000000e+00> : vector<8x12xf32>
    %146 = tpu.matmul %142, %145, %cst_56 {dimension_numbers = #tpu.dot_dimension_numbers<[1], [0], [0], [1], [0, 0, 1, 1], [], []>} : vector<8x8xf32>, vector<8x12xf32>, vector<8x12xf32> -> vector<8x12xf32>
    %cst_57 = arith.constant dense<0xFF800000> : vector<8xf32>
    %147 = vector.multi_reduction <maximumf>, %146, %cst_57 [1] : vector<8x12xf32> to vector<8xf32>
    %148 = vector.shape_cast %147 : vector<8xf32> to vector<8x1xf32>
    %149 = vector.broadcast %148 : vector<8x1xf32> to vector<8x12xf32>
    %150 = arith.subf %146, %149 : vector<8x12xf32>
    %151 = math.exp %150 : vector<8x12xf32>
    %cst_58 = arith.constant dense<0.000000e+00> : vector<8xf32>
    %152 = vector.multi_reduction <add>, %151, %cst_58 [1] : vector<8x12xf32> to vector<8xf32>
    %153 = vector.shape_cast %152 : vector<8xf32> to vector<8x1xf32>
    %154 = tpu.reciprocal %153 {approx = true} : vector<8x1xf32> -> vector<8x1xf32>
    %155 = vector.broadcast %154 : vector<8x1xf32> to vector<8x12xf32>
    %156 = arith.mulf %151, %155 : vector<8x12xf32>
    %157 = arith.addf %139, %156 : vector<8x12xf32>
    %cst_59 = arith.constant dense<0.000000e+00> : vector<8x8xf32>
    %158 = tpu.matmul %156, %144, %cst_59 {dimension_numbers = #tpu.dot_dimension_numbers<[1], [0], [0], [1], [0, 0, 1, 1], [], []>} : vector<8x12xf32>, vector<12x8xf32>, vector<8x8xf32> -> vector<8x8xf32>
    %c8_60 = arith.constant 8 : index
    %c24_61 = arith.constant 24 : index
    %159 = vector.load %arg11[%c8_60, %c24_61] : memref<16x32xf32, #tpu.memory_space<vmem>>, vector<8x8xf32>
    tpu.vector_store %arg11[%c8_60, %c24_61], %158 {strides = array<i32>} : memref<16x32xf32, #tpu.memory_space<vmem>>, vector<8x8xf32>,
    %cst_62 = arith.constant 2.500000e-01 : f32
    %160 = vector.broadcast %cst_62 : f32 to vector<8x12xf32>
    %161 = arith.mulf %157, %160 : vector<8x12xf32>
    %c8_63 = arith.constant 8 : index
    %c0_64 = arith.constant 0 : index
    %162 = vector.load %arg10[%c8_63, %c0_64] : memref<16x12xf32, #tpu.memory_space<vmem>>, vector<8x12xf32>
    tpu.vector_store %arg10[%c8_63, %c0_64], %161 {strides = array<i32>} : memref<16x12xf32, #tpu.memory_space<vmem>>, vector<8x12xf32>,
    %c0_65 = arith.constant 0 : index
    %c0_66 = arith.constant 0 : index
    %163 = vector.load %arg11[%c0_65, %c0_66] : memref<16x32xf32, #tpu.memory_space<vmem>>, vector<16x32xf32>
    %c0_67 = arith.constant 0 : index
    %c0_68 = arith.constant 0 : index
    %164 = vector.load %arg5[%c0_67, %c0_68] : memref<32x32xf32, #tpu.memory_space<vmem>>, vector<32x32xf32>
    %cst_69 = arith.constant dense<0.000000e+00> : vector<16x32xf32>
    %165 = tpu.matmul %163, %164, %cst_69 {dimension_numbers = #tpu.dot_dimension_numbers<[1], [0], [0], [1], [0, 0, 1, 1], [], []>} : vector<16x32xf32>, vector<32x32xf32>, vector<16x32xf32> -> vector<16x32xf32>
    %c0_70 = arith.constant 0 : index
    %c0_71 = arith.constant 0 : index
    %166 = vector.load %arg8[%c0_70, %c0_71] : memref<1x32xf32, #tpu.memory_space<vmem>>, vector<1x32xf32>
    %167 = vector.broadcast %166 : vector<1x32xf32> to vector<16x32xf32>
    %168 = arith.addf %165, %167 : vector<16x32xf32>
    %c0_72 = arith.constant 0 : index
    %c0_73 = arith.constant 0 : index
    %169 = vector.load %arg9[%c0_72, %c0_73] : memref<16x32xf32, #tpu.memory_space<vmem>>, vector<16x32xf32>
    tpu.vector_store %arg9[%c0_72, %c0_73], %168 {strides = array<i32>} : memref<16x32xf32, #tpu.memory_space<vmem>>, vector<16x32xf32>,
    return
  }
  func.func @transform_0(%arg0: i32) -> (i32, i32) {
    %c0_i32 = arith.constant 0 : i32
    %c0_i32_0 = arith.constant 0 : i32
    return %arg0, %c0_i32 : i32, i32
  }
  func.func @transform_1(%arg0: i32) -> (i32, i32) {
    %c0_i32 = arith.constant 0 : i32
    %c0_i32_0 = arith.constant 0 : i32
    return %arg0, %c0_i32 : i32, i32
  }
  func.func @transform_2(%arg0: i32) -> (i32, i32) {
    %c0_i32 = arith.constant 0 : i32
    %c0_i32_0 = arith.constant 0 : i32
    %c0_i32_1 = arith.constant 0 : i32
    return %c0_i32, %c0_i32_0 : i32, i32
  }
  func.func @transform_3(%arg0: i32) -> (i32, i32) {
    %c0_i32 = arith.constant 0 : i32
    %c0_i32_0 = arith.constant 0 : i32
    %c0_i32_1 = arith.constant 0 : i32
    return %c0_i32, %c0_i32_0 : i32, i32
  }
  func.func @transform_4(%arg0: i32) -> (i32, i32) {
    %c0_i32 = arith.constant 0 : i32
    %c0_i32_0 = arith.constant 0 : i32
    %c0_i32_1 = arith.constant 0 : i32
    return %c0_i32, %c0_i32_0 : i32, i32
  }
  func.func @transform_5(%arg0: i32) -> (i32, i32) {
    %c0_i32 = arith.constant 0 : i32
    %c0_i32_0 = arith.constant 0 : i32
    %c0_i32_1 = arith.constant 0 : i32
    return %c0_i32, %c0_i32_0 : i32, i32
  }
  func.func @transform_6(%arg0: i32) -> (i32, i32) {
    %c0_i32 = arith.constant 0 : i32
    %c0_i32_0 = arith.constant 0 : i32
    %c0_i32_1 = arith.constant 0 : i32
    return %c0_i32, %c0_i32_0 : i32, i32
  }
  func.func @transform_7(%arg0: i32) -> (i32, i32) {
    %c0_i32 = arith.constant 0 : i32
    %c0_i32_0 = arith.constant 0 : i32
    %c0_i32_1 = arith.constant 0 : i32
    return %c0_i32, %c0_i32_0 : i32, i32
  }
  func.func @transform_8(%arg0: i32) -> (i32, i32) {
    %c0_i32 = arith.constant 0 : i32
    %c0_i32_0 = arith.constant 0 : i32
    return %arg0, %c0_i32 : i32, i32
  }
  func.func @transform_9(%arg0: i32) -> (i32, i32) {
    %c0_i32 = arith.constant 0 : i32
    %c0_i32_0 = arith.constant 0 : i32
    return %arg0, %c0_i32 : i32, i32
  }
}

</mosaic_0001>

<llo_original>
// kernel: tpu_custom_call.1
$region0: #{tpu_custom_call.1}
  #allocation0 [shape = 'u32[]', space=smem, size = 0x4, offset = 0x4, fixed_abs, tag = 'smem constant byte address 0x4 - core index']
  #allocation1 [shape = 'u32[72,128]{1,0:T(1,128)}', space=vmem, size = 0x9000, scoped, tag = 'internal scratch']
  #allocation2 [shape = 'f32[16,32]{1,0:T(8,128)}', space=vmem, size = 0x2000, scoped, tag = 'scratch operand']
  %s0 = inlined_call_operand.hbm [shape: f32[16,32], index: 0, kind: input, shape index: {}]
  %s1 = inlined_call_operand.hbm [shape: f32[24,32], index: 1, kind: input, shape index: {}]
  %s2 = inlined_call_operand.hbm [shape: f32[32,32], index: 2, kind: input, shape index: {}]
  %s3 = inlined_call_operand.hbm [shape: f32[32,64], index: 3, kind: input, shape index: {}]
  %s4 = inlined_call_operand.hbm [shape: f32[32,32], index: 4, kind: input, shape index: {}]
  %s5 = inlined_call_operand.vmem [shape: f32[1,32], index: 5, kind: input, shape index: {}]
  %s6 = inlined_call_operand.hbm [shape: f32[24,64], index: 6, kind: input, shape index: {}]
  %s7 = inlined_call_operand.vmem [shape: f32[1,32], index: 7, kind: input, shape index: {}]
  %s8 = inlined_call_operand.hbm [shape: f32[16,32], index: 8, kind: output, shape index: {0}]
  %s9 = inlined_call_operand.hbm [shape: f32[16,12], index: 9, kind: output, shape index: {1}]
  %10 = xla_tuple %s8, %s9
  %s11 = sld [smem:[#allocation0]]
  $region74: #{tpu_custom_call.1} parent=0
    _
  %s13 = ssub.s32 1, %s11
  %s14 = scalar_select 0, %s13, %s11
  $region1: #{tpu_custom_call.1} parent=0
    #allocation3 [shape = 'u8[8192]{0}', space=vmem, size = 0x2000, scoped, tag = 'input window, operand 0, single buffered']
    #allocation4 [shape = 's32[1]{0}', space=sflag, size = 0x4, scoped, tag = 'scoped memory for tpu_custom_call.1']
    #allocation5 [shape = 's32[1]{0}', space=sflag, size = 0x4, scoped, tag = 'scoped memory for tpu_custom_call.1']
    #allocation6 [shape = 'u8[12288]{0}', space=vmem, size = 0x3000, scoped, tag = 'input window, operand 1, single buffered']
    #allocation7 [shape = 's32[1]{0}', space=sflag, size = 0x4, scoped, tag = 'scoped memory for tpu_custom_call.1']
    #allocation8 [shape = 'u8[16384]{0}', space=vmem, size = 0x4000, scoped, tag = 'input window, operand 2, single buffered']
    #allocation9 [shape = 'u8[16384]{0}', space=vmem, size = 0x4000, scoped, tag = 'input window, operand 3, single buffered']
    #allocation10 [shape = 's32[1]{0}', space=sflag, size = 0x4, scoped, tag = 'scoped memory for tpu_custom_call.1']
    #allocation11 [shape = 'u8[16384]{0}', space=vmem, size = 0x4000, scoped, tag = 'input window, operand 4, single buffered']
    #allocation12 [shape = 'u8[12288]{0}', space=vmem, size = 0x3000, scoped, tag = 'input window, operand 6, single buffered']
    #allocation13 [shape = 's32[1]{0}', space=sflag, size = 0x4, scoped, tag = 'scoped memory for tpu_custom_call.1']
    #allocation14 [shape = 'u8[8192]{0}', space=vmem, size = 0x2000, scoped, tag = 'output window, operand 0, single buffered']
    #allocation15 [shape = 'u8[8192]{0}', space=vmem, size = 0x2000, scoped, tag = 'output window, operand 1, single buffered']
    #allocation16 [shape = 's32[1]{0}', space=sflag, size = 0x4, scoped, tag = 'scoped memory for tpu_custom_call.1']
    %15 = vsyncpa [#allocation4], 0
    %16 = vsyncpa [#allocation7], 0
    %17 = vsyncpa [#allocation10], 0
    %18 = vsyncpa [#allocation13], 0
    %19 = vsyncpa [#allocation5], 0
    %20 = vsyncpa [#allocation16], 0
    // Predicated region
    $region2: #{tpu_custom_call.1} parent=1 // pred_check
      _
    $region3: #{tpu_custom_call.1} parent=1 // pred_check_branch
      %22 = sbr.rel (0) target = $region5
    $region4: #{tpu_custom_call.1} parent=1 // pred_region
      %24 = vsyncadd [#allocation4], 0
      %s25 = sshll.u32 %s0, 4
      %s26 = int_to_ptr.hbm [resolvable:$true] %s25
      %s27 = sshll.u32 [#allocation3], 4
      %s28 = int_to_ptr.vmem [resolvable:$true] %s27
      %33 = dma.hbm_to_vmem [thread:$0]  %s26, 256, %s28, [#allocation4], 128, 128, 8
    $region5: #{tpu_custom_call.1} parent=1 // pred_fallthru
      _
    // Predicated region
    $region6: #{tpu_custom_call.1} parent=1 // pred_check
      _
    $region7: #{tpu_custom_call.1} parent=1 // pred_check_branch
      %35 = sbr.rel (0) target = $region9
    $region8: #{tpu_custom_call.1} parent=1 // pred_region
      %37 = vsyncadd [#allocation7], 0
      %s38 = sshll.u32 %s1, 4
      %s39 = int_to_ptr.hbm [resolvable:$true] %s38
      %s40 = sshll.u32 [#allocation6], 4
      %s41 = int_to_ptr.vmem [resolvable:$true] %s40
      %46 = dma.hbm_to_vmem [thread:$0]  %s39, 384, %s41, [#allocation7], 128, 128, 8
    $region9: #{tpu_custom_call.1} parent=1 // pred_fallthru
      _
    // Predicated region
    $region10: #{tpu_custom_call.1} parent=1 // pred_check
      _
    $region11: #{tpu_custom_call.1} parent=1 // pred_check_branch
      %48 = sbr.rel (0) target = $region13
    $region12: #{tpu_custom_call.1} parent=1 // pred_region
      %50 = vsyncadd [#allocation7], 0
      %s51 = sshll.u32 %s2, 4
      %s52 = int_to_ptr.hbm [resolvable:$true] %s51
      %s53 = sshll.u32 [#allocation8], 4
      %s54 = int_to_ptr.vmem [resolvable:$true] %s53
      %59 = dma.hbm_to_vmem [thread:$0]  %s52, 512, %s54, [#allocation7], 128, 128, 8
    $region13: #{tpu_custom_call.1} parent=1 // pred_fallthru
      _
    // Predicated region
    $region14: #{tpu_custom_call.1} parent=1 // pred_check
      _
    $region15: #{tpu_custom_call.1} parent=1 // pred_check_branch
      %61 = sbr.rel (0) target = $region17
    $region16: #{tpu_custom_call.1} parent=1 // pred_region
      %63 = vsyncadd [#allocation10], 0
      %s64 = sshll.u32 %s3, 4
      %s65 = int_to_ptr.hbm [resolvable:$true] %s64
      %s66 = sshll.u32 [#allocation9], 4
      %s67 = int_to_ptr.vmem [resolvable:$true] %s66
      %72 = dma.hbm_to_vmem [thread:$0]  %s65, 512, %s67, [#allocation10], 128, 128, 8
    $region17: #{tpu_custom_call.1} parent=1 // pred_fallthru
      _
    // Predicated region
    $region18: #{tpu_custom_call.1} parent=1 // pred_check
      _
    $region19: #{tpu_custom_call.1} parent=1 // pred_check_branch
      %74 = sbr.rel (0) target = $region21
    $region20: #{tpu_custom_call.1} parent=1 // pred_region
      %76 = vsyncadd [#allocation10], 0
      %s77 = sshll.u32 %s4, 4
      %s78 = int_to_ptr.hbm [resolvable:$true] %s77
      %s79 = sshll.u32 [#allocation11], 4
      %s80 = int_to_ptr.vmem [resolvable:$true] %s79
      %85 = dma.hbm_to_vmem [thread:$0]  %s78, 512, %s80, [#allocation10], 128, 128, 8
    $region21: #{tpu_custom_call.1} parent=1 // pred_fallthru
      _
    // Predicated region
    $region22: #{tpu_custom_call.1} parent=1 // pred_check
      _
    $region23: #{tpu_custom_call.1} parent=1 // pred_check_branch
      %87 = sbr.rel (0) target = $region25
    $region24: #{tpu_custom_call.1} parent=1 // pred_region
      _
    $region25: #{tpu_custom_call.1} parent=1 // pred_fallthru
      _
    // Predicated region
    $region26: #{tpu_custom_call.1} parent=1 // pred_check
      _
    $region27: #{tpu_custom_call.1} parent=1 // pred_check_branch
      %89 = sbr.rel (0) target = $region29
    $region28: #{tpu_custom_call.1} parent=1 // pred_region
      %91 = vsyncadd [#allocation13], 0
      %s92 = sshll.u32 %s6, 4
      %s93 = int_to_ptr.hbm [resolvable:$true] %s92
      %s94 = sshll.u32 [#allocation12], 4
      %s95 = int_to_ptr.vmem [resolvable:$true] %s94
      %100 = dma.hbm_to_vmem [thread:$0]  %s93, 384, %s95, [#allocation13], 128, 128, 8
    $region29: #{tpu_custom_call.1} parent=1 // pred_fallthru
      _
    // Predicated region
    $region30: #{tpu_custom_call.1} parent=1 // pred_check
      _
    $region31: #{tpu_custom_call.1} parent=1 // pred_check_branch
      %102 = sbr.rel (0) target = $region33
    $region32: #{tpu_custom_call.1} parent=1 // pred_region
      _
    $region33: #{tpu_custom_call.1} parent=1 // pred_fallthru
      _
    // Predicated region
    $region34: #{tpu_custom_call.1} parent=1 // pred_check
      _
    $region35: #{tpu_custom_call.1} parent=1 // pred_check_branch
      %104 = sbr.rel (0) target = $region37
    $region36: #{tpu_custom_call.1} parent=1 // pred_region
      %106 = dma.done [#allocation4], 256
    $region37: #{tpu_custom_call.1} parent=1 // pred_fallthru
      _
    // Predicated region
    $region38: #{tpu_custom_call.1} parent=1 // pred_check
      _
    $region39: #{tpu_custom_call.1} parent=1 // pred_check_branch
      %108 = sbr.rel (0) target = $region41
    $region40: #{tpu_custom_call.1} parent=1 // pred_region
      %110 = dma.done [#allocation7], 384
    $region41: #{tpu_custom_call.1} parent=1 // pred_fallthru
      _
    // Predicated region
    $region42: #{tpu_custom_call.1} parent=1 // pred_check
      _
    $region43: #{tpu_custom_call.1} parent=1 // pred_check_branch
      %112 = sbr.rel (0) target = $region45
    $region44: #{tpu_custom_call.1} parent=1 // pred_region
      %114 = dma.done [#allocation7], 512
    $region45: #{tpu_custom_call.1} parent=1 // pred_fallthru
      _
    // Predicated region
    $region46: #{tpu_custom_call.1} parent=1 // pred_check
      _
    $region47: #{tpu_custom_call.1} parent=1 // pred_check_branch
      %116 = sbr.rel (0) target = $region49
    $region48: #{tpu_custom_call.1} parent=1 // pred_region
      %118 = dma.done [#allocation10], 512
    $region49: #{tpu_custom_call.1} parent=1 // pred_fallthru
      _
    // Predicated region
    $region50: #{tpu_custom_call.1} parent=1 // pred_check
      _
    $region51: #{tpu_custom_call.1} parent=1 // pred_check_branch
      %120 = sbr.rel (0) target = $region53
    $region52: #{tpu_custom_call.1} parent=1 // pred_region
      %122 = dma.done [#allocation10], 512
    $region53: #{tpu_custom_call.1} parent=1 // pred_fallthru
      _
    // Predicated region
    $region54: #{tpu_custom_call.1} parent=1 // pred_check
      _
    $region55: #{tpu_custom_call.1} parent=1 // pred_check_branch
      %124 = sbr.rel (0) target = $region57
    $region56: #{tpu_custom_call.1} parent=1 // pred_region
      %126 = dma.done [#allocation13], 384
    $region57: #{tpu_custom_call.1} parent=1 // pred_fallthru
      _
    %v127 = vld [vmem:[#allocation3] sm:$0xff]
    %v128 = vld [vmem:[#allocation3 + $0x8] sm:$0xff]
    %v129 = vld [vmem:[#allocation8] sm:$0xff]
    %v130 = vld [vmem:[#allocation8 + $0x8] sm:$0xff]
    %v131 = vld [vmem:[#allocation8 + $0x10] sm:$0xff]
    %v132 = vld [vmem:[#allocation8 + $0x18] sm:$0xff]
    %v133 = vld [vmem:[%s5] sm:$0x1]
    %v135 = vperm.slane %v133, 0
    %vm137 = vcmask 261120
    %v139 = vsel %vm137, %v127, 0
    %v142 = vsel %vm137, %v128, 0
    %144 = vmatpush.msra.mxu0 0.0
    %145 = vmatpush.msra.mxu0 0.0
    %146 = vmatpush.msra.mxu0 0.0
    %147 = vmatpush.msra.mxu0 0.0
    %148 = vmatpush.msra.mxu0 0.0
    %149 = vmatpush.msra.mxu0 0.0
    %150 = vmatpush.msra.mxu0 0.0
    %151 = vmatpush.msra.mxu0 0.0
    %152 = vmatpush.msra.mxu0 0.0
    %153 = vmatpush.msra.mxu0 0.0
    %154 = vmatpush.msra.mxu0 0.0
    %155 = vmatpush.msra.mxu0 0.0
    %156 = vmatpush.msra.mxu0 %v132
    %157 = vmatpush.msra.mxu0 %v131
    %158 = vmatpush.msra.mxu0 %v130
    %159 = vmatpush.msra.mxu0 %v129
    %160 = vmatmul.f32.gmra.mxu0 %v139
    %v161 = vpop.f32.mrf.mxu0
    %v162 = vadd.f32 %v135, %v161
    %163 = vmatmul.f32.gmra.mxu0 %v142
    %v164 = vpop.f32.mrf.mxu0
    %v165 = vadd.f32 %v135, %v164
    %166 = vdwg.mxu0
    %v167 = vld [vmem:[#allocation6] sm:$0xff]
    %v168 = vld [vmem:[#allocation6 + $0x8] sm:$0xff]
    %v169 = vld [vmem:[#allocation6 + $0x10] sm:$0xff]
    %v170 = vld [vmem:[#allocation9] sm:$0xff]
    %v171 = vld [vmem:[#allocation9 + $0x8] sm:$0xff]
    %v172 = vld [vmem:[#allocation9 + $0x10] sm:$0xff]
    %v173 = vld [vmem:[#allocation9 + $0x18] sm:$0xff]
    %v174 = vld [vmem:[#allocation12] sm:$0xff]
    %v175 = vld [vmem:[#allocation12 + $0x8] sm:$0xff]
    %v176 = vld [vmem:[#allocation12 + $0x10] sm:$0xff]
    %v178 = vsel %vm137, %v167, 0
    %v181 = vsel %vm137, %v168, 0
    %v184 = vsel %vm137, %v169, 0
    %186 = vmatpush.msra.mxu0 0.0
    %187 = vmatpush.msra.mxu0 0.0
    %188 = vmatpush.msra.mxu0 0.0
    %189 = vmatpush.msra.mxu0 0.0
    %190 = vmatpush.msra.mxu0 0.0
    %191 = vmatpush.msra.mxu0 0.0
    %192 = vmatpush.msra.mxu0 0.0
    %193 = vmatpush.msra.mxu0 0.0
    %194 = vmatpush.msra.mxu0 0.0
    %195 = vmatpush.msra.mxu0 0.0
    %196 = vmatpush.msra.mxu0 0.0
    %197 = vmatpush.msra.mxu0 0.0
    %198 = vmatpush.msra.mxu0 %v173
    %199 = vmatpush.msra.mxu0 %v172
    %200 = vmatpush.msra.mxu0 %v171
    %201 = vmatpush.msra.mxu0 %v170
    %202 = vmatmul.f32.gmra.mxu0 %v178
    %v203 = vpop.f32.mrf.mxu0
    %v204 = vadd.f32 %v174, %v203
    %205 = vmatmul.f32.gmra.mxu0 %v181
    %v206 = vpop.f32.mrf.mxu0
    %v207 = vadd.f32 %v175, %v206
    %208 = vmatmul.f32.gmra.mxu0 %v184
    %v209 = vpop.f32.mrf.mxu0
    %v210 = vadd.f32 %v176, %v209
    %211 = vdwg.mxu0
    %vm212 = vcmask 64512
    %v214 = vsel %vm212, %v162, 0
    %v217 = vsel %vm212, %v204, 0
    %v220 = vsel %vm212, %v207, 0
    %222 = vmatpush.xpose.msra.mxu0 0.0
    %223 = vmatpush.xpose.msra.mxu0 0.0
    %224 = vmatpush.xpose.msra.mxu0 0.0
    %225 = vmatpush.xpose.msra.mxu0 0.0
    %226 = vmatpush.xpose.msra.mxu0 0.0
    %227 = vmatpush.xpose.msra.mxu0 0.0
    %228 = vmatpush.xpose.msra.mxu0 0.0
    %229 = vmatpush.xpose.msra.mxu0 0.0
    %230 = vmatpush.xpose.msra.mxu0 0.0
    %231 = vmatpush.xpose.msra.mxu0 0.0
    %232 = vmatpush.xpose.msra.mxu0 0.0
    %233 = vmatpush.xpose.msra.mxu0 0.0
    %234 = vmatpush.xpose.msra.mxu0 0.0
    %235 = vmatpush.xpose.msra.mxu0 0.0
    %236 = vmatpush.xpose.msra.mxu0 %v220
    %237 = vmatpush.xpose.msra.mxu0 %v217
    %238 = vmatmul.f32.gmra.mxu0 %v214
    %v239 = vpop.f32.mrf.mxu0
    %v240 = vadd.f32 0.0, %v239
    %241 = vdwg.mxu0
    %vm242 = vcmask 97280
    %v243 = vsel %vm242, %v240, -inf
    %244 = vmax.xlane.f32.xlu0 %v243
    %v245 = vpop.xlane.xlu0 %244
    %v246 = vsub.f32 %v240, %v245
    %v247 = vmul.f32 %v246, 1.442695
    %v248 = vpow.pop %v247
    %v249 = vsel %vm242, %v248, 0.0
    %250 = vadd.xlane.f32.xlu0 %v249
    %v251 = vpop.xlane.xlu0 %250
    %v252 = vrcp.pop %v251
    %v253 = vmul.f32 %v248, %v252
    %v254 = vadd.f32 %v253, 0.0
    %255 = vrot.lane.b32.xlu0 %v204, 96
    %v256 = vpop.permute.xlu0 %255
    %257 = vrot.lane.b32.xlu0 %v207, 96
    %v258 = vpop.permute.xlu0 %257
    %v261 = vsel %vm242, %v253, 0
    %vm263 = vcmask 1043456
    %v264 = vsel %vm263, %v258, 0
    %266 = vmatpush.msra.mxu0 0.0
    %267 = vmatpush.msra.mxu0 0.0
    %268 = vmatpush.msra.mxu0 0.0
    %269 = vmatpush.msra.mxu0 0.0
    %270 = vmatpush.msra.mxu0 0.0
    %271 = vmatpush.msra.mxu0 0.0
    %272 = vmatpush.msra.mxu0 0.0
    %273 = vmatpush.msra.mxu0 0.0
    %274 = vmatpush.msra.mxu0 0.0
    %275 = vmatpush.msra.mxu0 0.0
    %276 = vmatpush.msra.mxu0 0.0
    %277 = vmatpush.msra.mxu0 0.0
    %278 = vmatpush.msra.mxu0 0.0
    %279 = vmatpush.msra.mxu0 0.0
    %280 = vmatpush.msra.mxu0 %v264
    %281 = vmatpush.msra.mxu0 %v256
    %282 = vmatmul.f32.gmra.mxu0 %v261
    %v283 = vpop.f32.mrf.mxu0
    %v284 = vadd.f32 0.0, %v283
    %285 = vdwg.mxu0
    %286 = vst.msk [vmem:[#allocation2] sm:$0xff] %vm212, %v284
    %287 = vrot.lane.b32.xlu0 %v162, 120
    %v288 = vpop.permute.xlu0 %287
    %289 = vrot.lane.b32.xlu0 %v204, 120
    %v290 = vpop.permute.xlu0 %289
    %291 = vrot.lane.b32.xlu0 %v207, 120
    %v292 = vpop.permute.xlu0 %291
    %v293 = vsel %vm212, %v288, 0
    %v295 = vsel %vm212, %v290, 0
    %v297 = vsel %vm212, %v292, 0
    %299 = vmatpush.xpose.msra.mxu0 0.0
    %300 = vmatpush.xpose.msra.mxu0 0.0
    %301 = vmatpush.xpose.msra.mxu0 0.0
    %302 = vmatpush.xpose.msra.mxu0 0.0
    %303 = vmatpush.xpose.msra.mxu0 0.0
    %304 = vmatpush.xpose.msra.mxu0 0.0
    %305 = vmatpush.xpose.msra.mxu0 0.0
    %306 = vmatpush.xpose.msra.mxu0 0.0
    %307 = vmatpush.xpose.msra.mxu0 0.0
    %308 = vmatpush.xpose.msra.mxu0 0.0
    %309 = vmatpush.xpose.msra.mxu0 0.0
    %310 = vmatpush.xpose.msra.mxu0 0.0
    %311 = vmatpush.xpose.msra.mxu0 0.0
    %312 = vmatpush.xpose.msra.mxu0 0.0
    %313 = vmatpush.xpose.msra.mxu0 %v297
    %314 = vmatpush.xpose.msra.mxu0 %v295
    %315 = vmatmul.f32.gmra.mxu0 %v293
    %v316 = vpop.f32.mrf.mxu0
    %v317 = vadd.f32 0.0, %v316
    %318 = vdwg.mxu0
    %v319 = vsel %vm242, %v317, -inf
    %320 = vmax.xlane.f32.xlu0 %v319
    %v321 = vpop.xlane.xlu0 %320
    %v322 = vsub.f32 %v317, %v321
    %v323 = vmul.f32 %v322, 1.442695
    %v324 = vpow.pop %v323
    %v325 = vsel %vm242, %v324, 0.0
    %326 = vadd.xlane.f32.xlu0 %v325
    %v327 = vpop.xlane.xlu0 %326
    %v328 = vrcp.pop %v327
    %v329 = vmul.f32 %v324, %v328
    %v330 = vadd.f32 %v254, %v329
    %331 = vrot.lane.b32.xlu0 %v204, 88
    %v332 = vpop.permute.xlu0 %331
    %333 = vrot.lane.b32.xlu0 %v207, 88
    %v334 = vpop.permute.xlu0 %333
    %v337 = vsel %vm242, %v329, 0
    %v339 = vsel %vm263, %v334, 0
    %341 = vmatpush.msra.mxu0 0.0
    %342 = vmatpush.msra.mxu0 0.0
    %343 = vmatpush.msra.mxu0 0.0
    %344 = vmatpush.msra.mxu0 0.0
    %345 = vmatpush.msra.mxu0 0.0
    %346 = vmatpush.msra.mxu0 0.0
    %347 = vmatpush.msra.mxu0 0.0
    %348 = vmatpush.msra.mxu0 0.0
    %349 = vmatpush.msra.mxu0 0.0
    %350 = vmatpush.msra.mxu0 0.0
    %351 = vmatpush.msra.mxu0 0.0
    %352 = vmatpush.msra.mxu0 0.0
    %353 = vmatpush.msra.mxu0 0.0
    %354 = vmatpush.msra.mxu0 0.0
    %355 = vmatpush.msra.mxu0 %v339
    %356 = vmatpush.msra.mxu0 %v332
    %357 = vmatmul.f32.gmra.mxu0 %v337
    %v358 = vpop.f32.mrf.mxu0
    %v359 = vadd.f32 0.0, %v358
    %360 = vdwg.mxu0
    %362 = vrot.lane.b32.xlu0 %v359, 8
    %v363 = vpop.permute.xlu0 %362
    %vm365 = vcmask 130112
    %366 = vst.msk [vmem:[#allocation2] sm:$0xff] %vm365, %v363
    %367 = vrot.lane.b32.xlu0 %v162, 112
    %v368 = vpop.permute.xlu0 %367
    %369 = vrot.lane.b32.xlu0 %v204, 112
    %v370 = vpop.permute.xlu0 %369
    %371 = vrot.lane.b32.xlu0 %v207, 112
    %v372 = vpop.permute.xlu0 %371
    %v373 = vsel %vm212, %v368, 0
    %v375 = vsel %vm212, %v370, 0
    %v377 = vsel %vm212, %v372, 0
    %379 = vmatpush.xpose.msra.mxu0 0.0
    %380 = vmatpush.xpose.msra.mxu0 0.0
    %381 = vmatpush.xpose.msra.mxu0 0.0
    %382 = vmatpush.xpose.msra.mxu0 0.0
    %383 = vmatpush.xpose.msra.mxu0 0.0
    %384 = vmatpush.xpose.msra.mxu0 0.0
    %385 = vmatpush.xpose.msra.mxu0 0.0
    %386 = vmatpush.xpose.msra.mxu0 0.0
    %387 = vmatpush.xpose.msra.mxu0 0.0
    %388 = vmatpush.xpose.msra.mxu0 0.0
    %389 = vmatpush.xpose.msra.mxu0 0.0
    %390 = vmatpush.xpose.msra.mxu0 0.0
    %391 = vmatpush.xpose.msra.mxu0 0.0
    %392 = vmatpush.xpose.msra.mxu0 0.0
    %393 = vmatpush.xpose.msra.mxu0 %v377
    %394 = vmatpush.xpose.msra.mxu0 %v375
    %395 = vmatmul.f32.gmra.mxu0 %v373
    %v396 = vpop.f32.mrf.mxu0
    %v397 = vadd.f32 0.0, %v396
    %398 = vdwg.mxu0
    %v399 = vsel %vm242, %v397, -inf
    %400 = vmax.xlane.f32.xlu0 %v399
    %v401 = vpop.xlane.xlu0 %400
    %v402 = vsub.f32 %v397, %v401
    %v403 = vmul.f32 %v402, 1.442695
    %v404 = vpow.pop %v403
    %v405 = vsel %vm242, %v404, 0.0
    %406 = vadd.xlane.f32.xlu0 %v405
    %v407 = vpop.xlane.xlu0 %406
    %v408 = vrcp.pop %v407
    %v409 = vmul.f32 %v404, %v408
    %v410 = vadd.f32 %v330, %v409
    %411 = vrot.lane.b32.xlu0 %v204, 80
    %v412 = vpop.permute.xlu0 %411
    %413 = vrot.lane.b32.xlu0 %v207, 80
    %v414 = vpop.permute.xlu0 %413
    %v417 = vsel %vm242, %v409, 0
    %v419 = vsel %vm263, %v414, 0
    %421 = vmatpush.msra.mxu0 0.0
    %422 = vmatpush.msra.mxu0 0.0
    %423 = vmatpush.msra.mxu0 0.0
    %424 = vmatpush.msra.mxu0 0.0
    %425 = vmatpush.msra.mxu0 0.0
    %426 = vmatpush.msra.mxu0 0.0
    %427 = vmatpush.msra.mxu0 0.0
    %428 = vmatpush.msra.mxu0 0.0
    %429 = vmatpush.msra.mxu0 0.0
    %430 = vmatpush.msra.mxu0 0.0
    %431 = vmatpush.msra.mxu0 0.0
    %432 = vmatpush.msra.mxu0 0.0
    %433 = vmatpush.msra.mxu0 0.0
    %434 = vmatpush.msra.mxu0 0.0
    %435 = vmatpush.msra.mxu0 %v419
    %436 = vmatpush.msra.mxu0 %v412
    %437 = vmatmul.f32.gmra.mxu0 %v417
    %v438 = vpop.f32.mrf.mxu0
    %v439 = vadd.f32 0.0, %v438
    %440 = vdwg.mxu0
    %442 = vrot.lane.b32.xlu0 %v439, 16
    %v443 = vpop.permute.xlu0 %442
    %vm445 = vcmask 195712
    %446 = vst.msk [vmem:[#allocation2] sm:$0xff] %vm445, %v443
    %447 = vrot.lane.b32.xlu0 %v162, 104
    %v448 = vpop.permute.xlu0 %447
    %449 = vrot.lane.b32.xlu0 %v204, 104
    %v450 = vpop.permute.xlu0 %449
    %451 = vrot.lane.b32.xlu0 %v207, 104
    %v452 = vpop.permute.xlu0 %451
    %v453 = vsel %vm212, %v448, 0
    %v455 = vsel %vm212, %v450, 0
    %v457 = vsel %vm212, %v452, 0
    %459 = vmatpush.xpose.msra.mxu0 0.0
    %460 = vmatpush.xpose.msra.mxu0 0.0
    %461 = vmatpush.xpose.msra.mxu0 0.0
    %462 = vmatpush.xpose.msra.mxu0 0.0
    %463 = vmatpush.xpose.msra.mxu0 0.0
    %464 = vmatpush.xpose.msra.mxu0 0.0
    %465 = vmatpush.xpose.msra.mxu0 0.0
    %466 = vmatpush.xpose.msra.mxu0 0.0
    %467 = vmatpush.xpose.msra.mxu0 0.0
    %468 = vmatpush.xpose.msra.mxu0 0.0
    %469 = vmatpush.xpose.msra.mxu0 0.0
    %470 = vmatpush.xpose.msra.mxu0 0.0
    %471 = vmatpush.xpose.msra.mxu0 0.0
    %472 = vmatpush.xpose.msra.mxu0 0.0
    %473 = vmatpush.xpose.msra.mxu0 %v457
    %474 = vmatpush.xpose.msra.mxu0 %v455
    %475 = vmatmul.f32.gmra.mxu0 %v453
    %v476 = vpop.f32.mrf.mxu0
    %v477 = vadd.f32 0.0, %v476
    %478 = vdwg.mxu0
    %v479 = vsel %vm242, %v477, -inf
    %480 = vmax.xlane.f32.xlu0 %v479
    %v481 = vpop.xlane.xlu0 %480
    %v482 = vsub.f32 %v477, %v481
    %v483 = vmul.f32 %v482, 1.442695
    %v484 = vpow.pop %v483
    %v485 = vsel %vm242, %v484, 0.0
    %486 = vadd.xlane.f32.xlu0 %v485
    %v487 = vpop.xlane.xlu0 %486
    %v488 = vrcp.pop %v487
    %v489 = vmul.f32 %v484, %v488
    %v490 = vadd.f32 %v410, %v489
    %491 = vrot.lane.b32.xlu0 %v204, 72
    %v492 = vpop.permute.xlu0 %491
    %493 = vrot.lane.b32.xlu0 %v207, 72
    %v494 = vpop.permute.xlu0 %493
    %v497 = vsel %vm242, %v489, 0
    %v499 = vsel %vm263, %v494, 0
    %501 = vmatpush.msra.mxu0 0.0
    %502 = vmatpush.msra.mxu0 0.0
    %503 = vmatpush.msra.mxu0 0.0
    %504 = vmatpush.msra.mxu0 0.0
    %505 = vmatpush.msra.mxu0 0.0
    %506 = vmatpush.msra.mxu0 0.0
    %507 = vmatpush.msra.mxu0 0.0
    %508 = vmatpush.msra.mxu0 0.0
    %509 = vmatpush.msra.mxu0 0.0
    %510 = vmatpush.msra.mxu0 0.0
    %511 = vmatpush.msra.mxu0 0.0
    %512 = vmatpush.msra.mxu0 0.0
    %513 = vmatpush.msra.mxu0 0.0
    %514 = vmatpush.msra.mxu0 0.0
    %515 = vmatpush.msra.mxu0 %v499
    %516 = vmatpush.msra.mxu0 %v492
    %517 = vmatmul.f32.gmra.mxu0 %v497
    %v518 = vpop.f32.mrf.mxu0
    %v519 = vadd.f32 0.0, %v518
    %520 = vdwg.mxu0
    %522 = vrot.lane.b32.xlu0 %v519, 24
    %v523 = vpop.permute.xlu0 %522
    %vm525 = vcmask 261312
    %526 = vst.msk [vmem:[#allocation2] sm:$0xff] %vm525, %v523
    %v527 = vmul.f32 %v490, 0.25
    %528 = vst.msk [vmem:[#allocation15] sm:$0xff] %vm242, %v527
    %v530 = vrot.slane %v207, 4
    %v531 = vrot.slane %v210, 4
    %v532 = vsel %vm263, %v530, %v531
    %v534 = vsel %vm212, %v165, 0
    %v536 = vsel %vm212, %v532, 0
    %v538 = vsel %vm212, %v531, 0
    %540 = vmatpush.xpose.msra.mxu0 0.0
    %541 = vmatpush.xpose.msra.mxu0 0.0
    %542 = vmatpush.xpose.msra.mxu0 0.0
    %543 = vmatpush.xpose.msra.mxu0 0.0
    %544 = vmatpush.xpose.msra.mxu0 0.0
    %545 = vmatpush.xpose.msra.mxu0 0.0
    %546 = vmatpush.xpose.msra.mxu0 0.0
    %547 = vmatpush.xpose.msra.mxu0 0.0
    %548 = vmatpush.xpose.msra.mxu0 0.0
    %549 = vmatpush.xpose.msra.mxu0 0.0
    %550 = vmatpush.xpose.msra.mxu0 0.0
    %551 = vmatpush.xpose.msra.mxu0 0.0
    %552 = vmatpush.xpose.msra.mxu0 0.0
    %553 = vmatpush.xpose.msra.mxu0 0.0
    %554 = vmatpush.xpose.msra.mxu0 %v538
    %555 = vmatpush.xpose.msra.mxu0 %v536
    %556 = vmatmul.f32.gmra.mxu0 %v534
    %v557 = vpop.f32.mrf.mxu0
    %v558 = vadd.f32 0.0, %v557
    %559 = vdwg.mxu0
    %v560 = vsel %vm242, %v558, -inf
    %561 = vmax.xlane.f32.xlu0 %v560
    %v562 = vpop.xlane.xlu0 %561
    %v563 = vsub.f32 %v558, %v562
    %v564 = vmul.f32 %v563, 1.442695
    %v565 = vpow.pop %v564
    %v566 = vsel %vm242, %v565, 0.0
    %567 = vadd.xlane.f32.xlu0 %v566
    %v568 = vpop.xlane.xlu0 %567
    %v569 = vrcp.pop %v568
    %v570 = vmul.f32 %v565, %v569
    %v571 = vadd.f32 %v570, 0.0
    %572 = vrot.lane.b32.xlu0 %v532, 96
    %v573 = vpop.permute.xlu0 %572
    %574 = vrot.lane.b32.xlu0 %v531, 96
    %v575 = vpop.permute.xlu0 %574
    %v578 = vsel %vm242, %v570, 0
    %v580 = vsel %vm263, %v575, 0
    %582 = vmatpush.msra.mxu0 0.0
    %583 = vmatpush.msra.mxu0 0.0
    %584 = vmatpush.msra.mxu0 0.0
    %585 = vmatpush.msra.mxu0 0.0
    %586 = vmatpush.msra.mxu0 0.0
    %587 = vmatpush.msra.mxu0 0.0
    %588 = vmatpush.msra.mxu0 0.0
    %589 = vmatpush.msra.mxu0 0.0
    %590 = vmatpush.msra.mxu0 0.0
    %591 = vmatpush.msra.mxu0 0.0
    %592 = vmatpush.msra.mxu0 0.0
    %593 = vmatpush.msra.mxu0 0.0
    %594 = vmatpush.msra.mxu0 0.0
    %595 = vmatpush.msra.mxu0 0.0
    %596 = vmatpush.msra.mxu0 %v580
    %597 = vmatpush.msra.mxu0 %v573
    %598 = vmatmul.f32.gmra.mxu0 %v578
    %v599 = vpop.f32.mrf.mxu0
    %v600 = vadd.f32 0.0, %v599
    %601 = vdwg.mxu0
    %602 = vst.msk [vmem:[#allocation2 + $0x8] sm:$0xff] %vm212, %v600
    %603 = vrot.lane.b32.xlu0 %v165, 120
    %v604 = vpop.permute.xlu0 %603
    %605 = vrot.lane.b32.xlu0 %v532, 120
    %v606 = vpop.permute.xlu0 %605
    %607 = vrot.lane.b32.xlu0 %v531, 120
    %v608 = vpop.permute.xlu0 %607
    %v609 = vsel %vm212, %v604, 0
    %v611 = vsel %vm212, %v606, 0
    %v613 = vsel %vm212, %v608, 0
    %615 = vmatpush.xpose.msra.mxu0 0.0
    %616 = vmatpush.xpose.msra.mxu0 0.0
    %617 = vmatpush.xpose.msra.mxu0 0.0
    %618 = vmatpush.xpose.msra.mxu0 0.0
    %619 = vmatpush.xpose.msra.mxu0 0.0
    %620 = vmatpush.xpose.msra.mxu0 0.0
    %621 = vmatpush.xpose.msra.mxu0 0.0
    %622 = vmatpush.xpose.msra.mxu0 0.0
    %623 = vmatpush.xpose.msra.mxu0 0.0
    %624 = vmatpush.xpose.msra.mxu0 0.0
    %625 = vmatpush.xpose.msra.mxu0 0.0
    %626 = vmatpush.xpose.msra.mxu0 0.0
    %627 = vmatpush.xpose.msra.mxu0 0.0
    %628 = vmatpush.xpose.msra.mxu0 0.0
    %629 = vmatpush.xpose.msra.mxu0 %v613
    %630 = vmatpush.xpose.msra.mxu0 %v611
    %631 = vmatmul.f32.gmra.mxu0 %v609
    %v632 = vpop.f32.mrf.mxu0
    %v633 = vadd.f32 0.0, %v632
    %634 = vdwg.mxu0
    %v635 = vsel %vm242, %v633, -inf
    %636 = vmax.xlane.f32.xlu0 %v635
    %v637 = vpop.xlane.xlu0 %636
    %v638 = vsub.f32 %v633, %v637
    %v639 = vmul.f32 %v638, 1.442695
    %v640 = vpow.pop %v639
    %v641 = vsel %vm242, %v640, 0.0
    %642 = vadd.xlane.f32.xlu0 %v641
    %v643 = vpop.xlane.xlu0 %642
    %v644 = vrcp.pop %v643
    %v645 = vmul.f32 %v640, %v644
    %v646 = vadd.f32 %v571, %v645
    %647 = vrot.lane.b32.xlu0 %v532, 88
    %v648 = vpop.permute.xlu0 %647
    %649 = vrot.lane.b32.xlu0 %v531, 88
    %v650 = vpop.permute.xlu0 %649
    %v653 = vsel %vm242, %v645, 0
    %v655 = vsel %vm263, %v650, 0
    %657 = vmatpush.msra.mxu0 0.0
    %658 = vmatpush.msra.mxu0 0.0
    %659 = vmatpush.msra.mxu0 0.0
    %660 = vmatpush.msra.mxu0 0.0
    %661 = vmatpush.msra.mxu0 0.0
    %662 = vmatpush.msra.mxu0 0.0
    %663 = vmatpush.msra.mxu0 0.0
    %664 = vmatpush.msra.mxu0 0.0
    %665 = vmatpush.msra.mxu0 0.0
    %666 = vmatpush.msra.mxu0 0.0
    %667 = vmatpush.msra.mxu0 0.0
    %668 = vmatpush.msra.mxu0 0.0
    %669 = vmatpush.msra.mxu0 0.0
    %670 = vmatpush.msra.mxu0 0.0
    %671 = vmatpush.msra.mxu0 %v655
    %672 = vmatpush.msra.mxu0 %v648
    %673 = vmatmul.f32.gmra.mxu0 %v653
    %v674 = vpop.f32.mrf.mxu0
    %v675 = vadd.f32 0.0, %v674
    %676 = vdwg.mxu0
    %678 = vrot.lane.b32.xlu0 %v675, 8
    %v679 = vpop.permute.xlu0 %678
    %681 = vst.msk [vmem:[#allocation2 + $0x8] sm:$0xff] %vm365, %v679
    %682 = vrot.lane.b32.xlu0 %v165, 112
    %v683 = vpop.permute.xlu0 %682
    %684 = vrot.lane.b32.xlu0 %v532, 112
    %v685 = vpop.permute.xlu0 %684
    %686 = vrot.lane.b32.xlu0 %v531, 112
    %v687 = vpop.permute.xlu0 %686
    %v688 = vsel %vm212, %v683, 0
    %v690 = vsel %vm212, %v685, 0
    %v692 = vsel %vm212, %v687, 0
    %694 = vmatpush.xpose.msra.mxu0 0.0
    %695 = vmatpush.xpose.msra.mxu0 0.0
    %696 = vmatpush.xpose.msra.mxu0 0.0
    %697 = vmatpush.xpose.msra.mxu0 0.0
    %698 = vmatpush.xpose.msra.mxu0 0.0
    %699 = vmatpush.xpose.msra.mxu0 0.0
    %700 = vmatpush.xpose.msra.mxu0 0.0
    %701 = vmatpush.xpose.msra.mxu0 0.0
    %702 = vmatpush.xpose.msra.mxu0 0.0
    %703 = vmatpush.xpose.msra.mxu0 0.0
    %704 = vmatpush.xpose.msra.mxu0 0.0
    %705 = vmatpush.xpose.msra.mxu0 0.0
    %706 = vmatpush.xpose.msra.mxu0 0.0
    %707 = vmatpush.xpose.msra.mxu0 0.0
    %708 = vmatpush.xpose.msra.mxu0 %v692
    %709 = vmatpush.xpose.msra.mxu0 %v690
    %710 = vmatmul.f32.gmra.mxu0 %v688
    %v711 = vpop.f32.mrf.mxu0
    %v712 = vadd.f32 0.0, %v711
    %713 = vdwg.mxu0
    %v714 = vsel %vm242, %v712, -inf
    %715 = vmax.xlane.f32.xlu0 %v714
    %v716 = vpop.xlane.xlu0 %715
    %v717 = vsub.f32 %v712, %v716
    %v718 = vmul.f32 %v717, 1.442695
    %v719 = vpow.pop %v718
    %v720 = vsel %vm242, %v719, 0.0
    %721 = vadd.xlane.f32.xlu0 %v720
    %v722 = vpop.xlane.xlu0 %721
    %v723 = vrcp.pop %v722
    %v724 = vmul.f32 %v719, %v723
    %v725 = vadd.f32 %v646, %v724
    %726 = vrot.lane.b32.xlu0 %v532, 80
    %v727 = vpop.permute.xlu0 %726
    %728 = vrot.lane.b32.xlu0 %v531, 80
    %v729 = vpop.permute.xlu0 %728
    %v732 = vsel %vm242, %v724, 0
    %v734 = vsel %vm263, %v729, 0
    %736 = vmatpush.msra.mxu0 0.0
    %737 = vmatpush.msra.mxu0 0.0
    %738 = vmatpush.msra.mxu0 0.0
    %739 = vmatpush.msra.mxu0 0.0
    %740 = vmatpush.msra.mxu0 0.0
    %741 = vmatpush.msra.mxu0 0.0
    %742 = vmatpush.msra.mxu0 0.0
    %743 = vmatpush.msra.mxu0 0.0
    %744 = vmatpush.msra.mxu0 0.0
    %745 = vmatpush.msra.mxu0 0.0
    %746 = vmatpush.msra.mxu0 0.0
    %747 = vmatpush.msra.mxu0 0.0
    %748 = vmatpush.msra.mxu0 0.0
    %749 = vmatpush.msra.mxu0 0.0
    %750 = vmatpush.msra.mxu0 %v734
    %751 = vmatpush.msra.mxu0 %v727
    %752 = vmatmul.f32.gmra.mxu0 %v732
    %v753 = vpop.f32.mrf.mxu0
    %v754 = vadd.f32 0.0, %v753
    %755 = vdwg.mxu0
    %757 = vrot.lane.b32.xlu0 %v754, 16
    %v758 = vpop.permute.xlu0 %757
    %760 = vst.msk [vmem:[#allocation2 + $0x8] sm:$0xff] %vm445, %v758
    %761 = vrot.lane.b32.xlu0 %v165, 104
    %v762 = vpop.permute.xlu0 %761
    %763 = vrot.lane.b32.xlu0 %v532, 104
    %v764 = vpop.permute.xlu0 %763
    %765 = vrot.lane.b32.xlu0 %v531, 104
    %v766 = vpop.permute.xlu0 %765
    %v767 = vsel %vm212, %v762, 0
    %v769 = vsel %vm212, %v764, 0
    %v771 = vsel %vm212, %v766, 0
    %773 = vmatpush.xpose.msra.mxu0 0.0
    %774 = vmatpush.xpose.msra.mxu0 0.0
    %775 = vmatpush.xpose.msra.mxu0 0.0
    %776 = vmatpush.xpose.msra.mxu0 0.0
    %777 = vmatpush.xpose.msra.mxu0 0.0
    %778 = vmatpush.xpose.msra.mxu0 0.0
    %779 = vmatpush.xpose.msra.mxu0 0.0
    %780 = vmatpush.xpose.msra.mxu0 0.0
    %781 = vmatpush.xpose.msra.mxu0 0.0
    %782 = vmatpush.xpose.msra.mxu0 0.0
    %783 = vmatpush.xpose.msra.mxu0 0.0
    %784 = vmatpush.xpose.msra.mxu0 0.0
    %785 = vmatpush.xpose.msra.mxu0 0.0
    %786 = vmatpush.xpose.msra.mxu0 0.0
    %787 = vmatpush.xpose.msra.mxu0 %v771
    %788 = vmatpush.xpose.msra.mxu0 %v769
    %789 = vmatmul.f32.gmra.mxu0 %v767
    %v790 = vpop.f32.mrf.mxu0
    %v791 = vadd.f32 0.0, %v790
    %792 = vdwg.mxu0
    %v793 = vsel %vm242, %v791, -inf
    %794 = vmax.xlane.f32.xlu0 %v793
    %v795 = vpop.xlane.xlu0 %794
    %v796 = vsub.f32 %v791, %v795
    %v797 = vmul.f32 %v796, 1.442695
    %v798 = vpow.pop %v797
    %v799 = vsel %vm242, %v798, 0.0
    %800 = vadd.xlane.f32.xlu0 %v799
    %v801 = vpop.xlane.xlu0 %800
    %v802 = vrcp.pop %v801
    %v803 = vmul.f32 %v798, %v802
    %v804 = vadd.f32 %v725, %v803
    %805 = vrot.lane.b32.xlu0 %v532, 72
    %v806 = vpop.permute.xlu0 %805
    %807 = vrot.lane.b32.xlu0 %v531, 72
    %v808 = vpop.permute.xlu0 %807
    %v811 = vsel %vm242, %v803, 0
    %v813 = vsel %vm263, %v808, 0
    %815 = vmatpush.msra.mxu0 0.0
    %816 = vmatpush.msra.mxu0 0.0
    %817 = vmatpush.msra.mxu0 0.0
    %818 = vmatpush.msra.mxu0 0.0
    %819 = vmatpush.msra.mxu0 0.0
    %820 = vmatpush.msra.mxu0 0.0
    %821 = vmatpush.msra.mxu0 0.0
    %822 = vmatpush.msra.mxu0 0.0
    %823 = vmatpush.msra.mxu0 0.0
    %824 = vmatpush.msra.mxu0 0.0
    %825 = vmatpush.msra.mxu0 0.0
    %826 = vmatpush.msra.mxu0 0.0
    %827 = vmatpush.msra.mxu0 0.0
    %828 = vmatpush.msra.mxu0 0.0
    %829 = vmatpush.msra.mxu0 %v813
    %830 = vmatpush.msra.mxu0 %v806
    %831 = vmatmul.f32.gmra.mxu0 %v811
    %v832 = vpop.f32.mrf.mxu0
    %v833 = vadd.f32 0.0, %v832
    %834 = vdwg.mxu0
    %836 = vrot.lane.b32.xlu0 %v833, 24
    %v837 = vpop.permute.xlu0 %836
    %839 = vst.msk [vmem:[#allocation2 + $0x8] sm:$0xff] %vm525, %v837
    %v840 = vmul.f32 %v804, 0.25
    %841 = vst.msk [vmem:[#allocation15 + $0x8] sm:$0xff] %vm242, %v840
    %v842 = vld [vmem:[#allocation2] sm:$0xff]
    %v843 = vld [vmem:[#allocation2 + $0x8] sm:$0xff]
    %v844 = vld [vmem:[#allocation11] sm:$0xff]
    %v845 = vld [vmem:[#allocation11 + $0x8] sm:$0xff]
    %v846 = vld [vmem:[#allocation11 + $0x10] sm:$0xff]
    %v847 = vld [vmem:[#allocation11 + $0x18] sm:$0xff]
    %v848 = vld [vmem:[%s7] sm:$0x1]
    %v850 = vperm.slane %v848, 0
    %v853 = vsel %vm137, %v842, 0
    %v856 = vsel %vm137, %v843, 0
    %858 = vmatpush.msra.mxu0 0.0
    %859 = vmatpush.msra.mxu0 0.0
    %860 = vmatpush.msra.mxu0 0.0
    %861 = vmatpush.msra.mxu0 0.0
    %862 = vmatpush.msra.mxu0 0.0
    %863 = vmatpush.msra.mxu0 0.0
    %864 = vmatpush.msra.mxu0 0.0
    %865 = vmatpush.msra.mxu0 0.0
    %866 = vmatpush.msra.mxu0 0.0
    %867 = vmatpush.msra.mxu0 0.0
    %868 = vmatpush.msra.mxu0 0.0
    %869 = vmatpush.msra.mxu0 0.0
    %870 = vmatpush.msra.mxu0 %v847
    %871 = vmatpush.msra.mxu0 %v846
    %872 = vmatpush.msra.mxu0 %v845
    %873 = vmatpush.msra.mxu0 %v844
    %874 = vmatmul.f32.gmra.mxu0 %v853
    %v875 = vpop.f32.mrf.mxu0
    %v876 = vadd.f32 %v850, %v875
    %877 = vmatmul.f32.gmra.mxu0 %v856
    %v878 = vpop.f32.mrf.mxu0
    %v879 = vadd.f32 %v850, %v878
    %880 = vdwg.mxu0
    %881 = vst.msk [vmem:[#allocation14] sm:$0xff] %vm137, %v876
    %882 = vst.msk [vmem:[#allocation14 + $0x8] sm:$0xff] %vm137, %v879
    // Predicated region
    $region58: #{tpu_custom_call.1} parent=1 // pred_check
      _
    $region59: #{tpu_custom_call.1} parent=1 // pred_check_branch
      %884 = sbr.rel (0) target = $region61
    $region60: #{tpu_custom_call.1} parent=1 // pred_region
      %886 = vsyncadd [#allocation5], 0
      %s887 = sshll.u32 [#allocation14], 4
      %s888 = int_to_ptr.vmem [resolvable:$true] %s887
      %s889 = sshll.u32 %s8, 4
      %s890 = int_to_ptr.hbm [resolvable:$true] %s889
      %895 = dma.vmem_to_hbm [thread:$0]  %s888, 256, %s890, [#allocation5], 128, 128, 8
    $region61: #{tpu_custom_call.1} parent=1 // pred_fallthru
      _
    // Predicated region
    $region62: #{tpu_custom_call.1} parent=1 // pred_check
      _
    $region63: #{tpu_custom_call.1} parent=1 // pred_check_branch
      %897 = sbr.rel (0) target = $region65
    $region64: #{tpu_custom_call.1} parent=1 // pred_region
      %899 = vsyncadd [#allocation16], 0
      %s900 = sshll.u32 [#allocation15], 4
      %s901 = int_to_ptr.vmem [resolvable:$true] %s900
      %s902 = sshll.u32 %s9, 4
      %s903 = int_to_ptr.hbm [resolvable:$true] %s902
      %908 = dma.vmem_to_hbm [thread:$0]  %s901, 256, %s903, [#allocation16], 128, 128, 8
    $region65: #{tpu_custom_call.1} parent=1 // pred_fallthru
      _
    // Predicated region
    $region66: #{tpu_custom_call.1} parent=1 // pred_check
      _
    $region67: #{tpu_custom_call.1} parent=1 // pred_check_branch
      %910 = sbr.rel (0) target = $region69
    $region68: #{tpu_custom_call.1} parent=1 // pred_region
      %912 = dma.done [#allocation5], 256
    $region69: #{tpu_custom_call.1} parent=1 // pred_fallthru
      _
    // Predicated region
    $region70: #{tpu_custom_call.1} parent=1 // pred_check
      _
    $region71: #{tpu_custom_call.1} parent=1 // pred_check_branch
      %914 = sbr.rel (0) target = $region73
    $region72: #{tpu_custom_call.1} parent=1 // pred_region
      %916 = dma.done [#allocation16], 256
    $region73: #{tpu_custom_call.1} parent=1 // pred_fallthru
      _
    %917 = vsyncpa [#allocation4], 1
    %918 = vsyncpa [#allocation7], 1
    %919 = vsyncpa [#allocation10], 1
    %920 = vsyncpa [#allocation13], 1
    %921 = vsyncpa [#allocation5], 1
    %922 = vsyncpa [#allocation16], 1

</llo_original>
